<compile_context>
chip_gen: v7x
topology: tpu7x:2x2x1
jax: 0.10.0
libtpu: 0.0.40
codegen_flags: <defaults>
</compile_context>

<pallas_src>
import functools

import jax
import jax.numpy as jnp
from jax.experimental import pallas as pl
from jax.experimental.pallas import tpu as pltpu


def _round_up(x, m):
    return (x + m - 1) // m * m


def _vmem_capacity_bytes():
    """Physical VMEM per TensorCore; conservative fallback if the query fails."""
    try:
        cap = getattr(pltpu.get_tpu_info(), "vmem_capacity_bytes", None)
        if cap:
            return int(cap)
    except Exception:
        pass
    return 64 * 1024 * 1024  # v7x per-TC size; safe everywhere


def _pick_h_tile(h_pad, target):
    """Largest multiple of 128 <= target that divides h_pad (h_pad % 128 == 0)."""
    target = max(128, min(target, h_pad))
    t = (target // 128) * 128
    while t > 128:
        if h_pad % t == 0:
            return t
        t -= 128
    return 128


def _ffn_kernel(x_ref, gamma_ref, beta_ref, w1_ref, b1_ref, w2_ref, b2_ref,
                o_ref, xn_ref, acc_ref, *, dim_true, eps, gelu_approximate):
    # x_ref: (TR, Dp)  gamma/beta/b2: (1, Dp)  w1: (Dp, TH)  b1: (1, TH)  w2: (TH, Dp)
    # xn_ref: (TR, Dp) scratch in MXU dtype, acc_ref: (TR, Dp) f32 scratch.
    h_idx = pl.program_id(1)

    # ---- h_idx == 0: LayerNorm the row tile once, zero the accumulator ------
    @pl.when(h_idx == 0)
    def _():
        xf = x_ref[...].astype(jnp.float32)
        inv_d = jnp.float32(1.0 / dim_true)
        # One-pass stats: padded feature columns of x are zero, so the sums are
        # exact; divide by the *true* feature count, not the padded one.
        mean = jnp.sum(xf, axis=-1, keepdims=True) * inv_d
        mean_sq = jnp.sum(xf * xf, axis=-1, keepdims=True) * inv_d
        var = mean_sq - mean * mean
        inv = jax.lax.rsqrt(var + eps)
        g = gamma_ref[...].astype(jnp.float32)
        b = beta_ref[...].astype(jnp.float32)
        scale = inv * g                        # fold gamma * rsqrt(var+eps)
        shift = b - mean * scale
        xn = xf * scale + shift                # padded cols stay exactly 0
        xn_ref[...] = xn.astype(xn_ref.dtype)  # cached in MXU dtype
        acc_ref[...] = jnp.zeros_like(acc_ref)

    # ---- every hidden tile: (TR,Dp)@(Dp,TH) -> GELU -> (TR,TH)@(TH,Dp) ------
    h = jnp.dot(xn_ref[...], w1_ref[...], preferred_element_type=jnp.float32)
    h = h + b1_ref[...].astype(jnp.float32)
    h = jax.nn.gelu(h, approximate=gelu_approximate)
    acc_ref[...] += jnp.dot(h.astype(w2_ref.dtype), w2_ref[...],
                            preferred_element_type=jnp.float32)

    # ---- last hidden tile: add output bias and write the row tile -----------
    @pl.when(h_idx == pl.num_programs(1) - 1)
    def _():
        y = acc_ref[...] + b2_ref[...].astype(jnp.float32)
        o_ref[...] = y.astype(o_ref.dtype)


def feed_forward(x, gamma, beta, w1, b1, w2, b2, *,
                 eps=1e-5,
                 gelu_approximate=True,    # False = torch's exact-erf nn.GELU
                 compute_dtype=None,       # e.g. jnp.bfloat16 for production
                 row_tile=None,
                 h_tile=None):
    """x: (B, S, D) -> (B, S, D).  gamma/beta/b1/b2 are (1, F) row vectors."""
    B, S, D = x.shape
    H = w1.shape[1]
    R = B * S

    # ---- per-generation sizing ----------------------------------------------
    vmem_cap = _vmem_capacity_bytes()
    small_vmem = vmem_cap <= 96 * 1024 * 1024          # v7x: 64 MiB per TC
    if row_tile is None:
        row_tile = 128 if small_vmem else 512          # v7x vs v5e/v6e (128 MiB)
    if h_tile is None:
        h_tile = 512 if small_vmem else 1024

    # ---- lane alignment: pad feature dims to multiples of 128 ---------------
    D_pad = _round_up(D, 128)
    H_pad = _round_up(H, 128)
    TH = _pick_h_tile(H_pad, h_tile)
    TR = R if R <= row_tile else _round_up(row_tile, 8)

    mm_dtype = jnp.dtype(compute_dtype) if compute_dtype is not None else jnp.dtype(w1.dtype)

    def pad2(a, r, c):
        return jnp.pad(a, ((0, r - a.shape[0]), (0, c - a.shape[1])))

    x2d = pad2(x.reshape(R, D), R, D_pad)
    gamma_p = pad2(gamma, 1, D_pad)
    beta_p = pad2(beta, 1, D_pad)
    w1_p = pad2(w1, D_pad, H_pad).astype(mm_dtype)
    b1_p = pad2(b1, 1, H_pad)
    w2_p = pad2(w2, H_pad, D_pad).astype(mm_dtype)
    b2_p = pad2(b2, 1, D_pad)

    num_row_tiles = pl.cdiv(R, TR)
    num_h_tiles = H_pad // TH
    grid = (num_row_tiles, num_h_tiles)

    x_bytes = jnp.dtype(x.dtype).itemsize
    w_bytes = jnp.dtype(mm_dtype).itemsize
    b_bytes = jnp.dtype(b1_p.dtype).itemsize

    # VMEM budget: double-buffered streamed tiles (x, out, w1/w2/b1), one copy of
    # the tiny constant-index vectors, scratch, and f32 intermediates.
    need = (
        2 * TR * D_pad * x_bytes                      # x row tiles
        + 2 * TR * D_pad * x_bytes                    # out row tiles
        + 2 * (D_pad * TH + TH * D_pad) * w_bytes     # streamed w1/w2 tiles
        + 2 * TH * b_bytes                            # streamed b1 tile
        + 3 * D_pad * 4                               # gamma / beta / b2
        + TR * D_pad * (w_bytes + 4)                  # xn scratch + f32 accumulator
        + TR * TH * (4 + w_bytes)                     # h intermediate (+ cast copy)
        + 2 * TR * D_pad * 4                          # LayerNorm f32 temporaries
    )
    vmem_limit = int(min(max(int(need * 1.25), 32 * 1024 * 1024),
                         vmem_cap - 8 * 1024 * 1024))

    cost = pl.CostEstimate(
        flops=int(4 * R * D_pad * H_pad),             # two matmuls
        transcendentals=int(R * H_pad),               # tanh/erf per hidden element
        bytes_accessed=int(
            2 * R * D_pad * x_bytes                                   # x in + out
            + num_row_tiles * (2 * D_pad * H_pad * w_bytes            # w1/w2 re-streamed
                               + H_pad * b_bytes)                     #   per row tile
            + 3 * D_pad * 4),
    )

    kernel = functools.partial(_ffn_kernel, dim_true=D, eps=eps,
                               gelu_approximate=gelu_approximate)

    out = pl.pallas_call(
        kernel,
        out_shape=jax.ShapeDtypeStruct((R, D_pad), x.dtype),
        grid_spec=pltpu.PrefetchScalarGridSpec(
            num_scalar_prefetch=0,
            grid=grid,
            in_specs=[
                # x row tile: constant along the inner hidden axis -> fetched
                # once per row tile, double-buffered across row tiles.
                pl.BlockSpec((TR, D_pad), lambda i, h: (i, 0)),
                # Tiny constant-index vectors (DMA'd once, stay resident).
                # TODO(synk): pipeline_mode=pl.Buffered(1) here once single-buffer
                # pipeline mode is universally supported; the heavy operands
                # (w1/w2) are now streamed so the saving is a few KiB only.
                pl.BlockSpec((1, D_pad), lambda i, h: (0, 0)),   # gamma
                pl.BlockSpec((1, D_pad), lambda i, h: (0, 0)),   # beta
                # Hidden-dim-streamed weight tiles.
                pl.BlockSpec((D_pad, TH), lambda i, h: (0, h)),  # w1 tile
                pl.BlockSpec((1, TH), lambda i, h: (0, h)),      # b1 tile
                pl.BlockSpec((TH, D_pad), lambda i, h: (h, 0)),  # w2 tile
                pl.BlockSpec((1, D_pad), lambda i, h: (0, 0)),   # b2
            ],
            out_specs=pl.BlockSpec((TR, D_pad), lambda i, h: (i, 0)),
            scratch_shapes=[
                pltpu.VMEM((TR, D_pad), mm_dtype),      # cached LayerNorm result
                pltpu.VMEM((TR, D_pad), jnp.float32),   # f32 output accumulator
            ],
        ),
        compiler_params=pltpu.CompilerParams(
            # Rows independent -> "parallel" (megacore / v7x 2-TC sharding);
            # hidden axis is a scratch-carried reduction -> "arbitrary", last.
            # TODO(synk): verify with xprof that v7x shards the row axis across
            # both TensorCores; if not, switch to pltpu.CORE_PARALLEL / core_map.
            dimension_semantics=("parallel", "arbitrary"),
            vmem_limit_bytes=vmem_limit,
        ),
        cost_estimate=cost,
    )(x2d, gamma_p, beta_p, w1_p, b1_p, w2_p, b2_p)

    return out[:, :D].reshape(B, S, D)


if __name__ == "__main__":
    # Small shapes consistent with the module: tokens of size `dim`.
    B, S, D, H = 2, 8, 32, 64

    key = jax.random.PRNGKey(0)
    kx, kw1, kb1, kw2, kb2 = jax.random.split(key, 5)

    x = jax.random.normal(kx, (B, S, D), dtype=jnp.float32)
    gamma = jnp.ones((1, D), dtype=jnp.float32)           # LayerNorm weight
    beta = jnp.zeros((1, D), dtype=jnp.float32)           # LayerNorm bias
    w1 = jax.random.normal(kw1, (D, H), dtype=jnp.float32) * (1.0 / jnp.sqrt(D))
    b1 = jax.random.normal(kb1, (1, H), dtype=jnp.float32) * 0.01
    w2 = jax.random.normal(kw2, (H, D), dtype=jnp.float32) * (1.0 / jnp.sqrt(H))
    b2 = jax.random.normal(kb2, (1, D), dtype=jnp.float32) * 0.01

    def ref(x, approximate):
        mu = jnp.mean(x, axis=-1, keepdims=True)
        var = jnp.mean((x - mu) ** 2, axis=-1, keepdims=True)
        xn = (x - mu) / jnp.sqrt(var + 1e-5) * gamma[0] + beta[0]
        h = jax.nn.gelu(xn @ w1 + b1[0], approximate=approximate)
        return h @ w2 + b2[0]

    # Native-dtype (f32) matmul path.
    y = feed_forward(x, gamma, beta, w1, b1, w2, b2)
    jax.block_until_ready(y)
    assert jnp.allclose(y, ref(x, True), atol=1e-4, rtol=1e-4)

    # Production path: weights pre-cast to bf16 once, f32 MXU accumulation.
    y_bf16 = feed_forward(x, gamma, beta, w1, b1, w2, b2,
                          compute_dtype=jnp.bfloat16)
    jax.block_until_ready(y_bf16)
    assert jnp.allclose(y_bf16, ref(x, True), atol=3e-2, rtol=3e-2)

    print("KERNEL_OK")
</pallas_src>

<mosaic_0001>
module attributes {stable_mosaic.version = 11 : i64} {
  func.func @_ffn_kernel(%arg0: i32, %arg1: i32, %arg2: memref<16x128xf32, #tpu.memory_space<vmem>>, %arg3: memref<1x128xf32, #tpu.memory_space<vmem>>, %arg4: memref<1x128xf32, #tpu.memory_space<vmem>>, %arg5: memref<128x128xf32, #tpu.memory_space<vmem>>, %arg6: memref<1x128xf32, #tpu.memory_space<vmem>>, %arg7: memref<128x128xf32, #tpu.memory_space<vmem>>, %arg8: memref<1x128xf32, #tpu.memory_space<vmem>>, %arg9: memref<16x128xf32, #tpu.memory_space<vmem>>, %arg10: memref<16x128xf32, #tpu.memory_space<vmem>>, %arg11: memref<16x128xf32, #tpu.memory_space<vmem>>) attributes {dimension_semantics = [#tpu.dimension_semantics<parallel>, #tpu.dimension_semantics<arbitrary>], iteration_bounds = array<i64: 1, 1>, scalar_prefetch = 0 : i64, scratch_operands = 2 : i64, tpu.core_type = #tpu.core_type<tc>, window_params = [{transform_indices = @transform_0, window_bounds = array<i64: 16, 128>}, {pipeline_mode = #tpu.pipeline_mode<synchronous>, transform_indices = @transform_1, window_bounds = array<i64: 1, 128>}, {pipeline_mode = #tpu.pipeline_mode<synchronous>, transform_indices = @transform_2, window_bounds = array<i64: 1, 128>}, {transform_indices = @transform_3, window_bounds = array<i64: 128, 128>}, {transform_indices = @transform_4, window_bounds = array<i64: 1, 128>}, {transform_indices = @transform_5, window_bounds = array<i64: 128, 128>}, {pipeline_mode = #tpu.pipeline_mode<synchronous>, transform_indices = @transform_6, window_bounds = array<i64: 1, 128>}, {transform_indices = @transform_7, window_bounds = array<i64: 16, 128>}]} {
    %c0_i32 = arith.constant 0 : i32
    %0 = arith.cmpi eq, %arg1, %c0_i32 : i32
    %1 = arith.extui %0 : i1 to i32
    %c0_i32_0 = arith.constant 0 : i32
    %2 = arith.cmpi ne, %1, %c0_i32_0 : i32
    scf.if %2 {
      %c0_19 = arith.constant 0 : index
      %c0_20 = arith.constant 0 : index
      %30 = vector.load %arg2[%c0_19, %c0_20] : memref<16x128xf32, #tpu.memory_space<vmem>>, vector<16x128xf32>
      %cst_21 = arith.constant dense<0.000000e+00> : vector<16xf32>
      %31 = vector.multi_reduction <add>, %30, %cst_21 [1] : vector<16x128xf32> to vector<16xf32>
      %32 = vector.shape_cast %31 : vector<16xf32> to vector<16x1xf32>
      %cst_22 = arith.constant 3.125000e-02 : f32
      %33 = vector.broadcast %cst_22 : f32 to vector<16x1xf32>
      %34 = arith.mulf %32, %33 : vector<16x1xf32>
      %35 = arith.mulf %30, %30 : vector<16x128xf32>
      %cst_23 = arith.constant dense<0.000000e+00> : vector<16xf32>
      %36 = vector.multi_reduction <add>, %35, %cst_23 [1] : vector<16x128xf32> to vector<16xf32>
      %37 = vector.shape_cast %36 : vector<16xf32> to vector<16x1xf32>
      %cst_24 = arith.constant 3.125000e-02 : f32
      %38 = vector.broadcast %cst_24 : f32 to vector<16x1xf32>
      %39 = arith.mulf %37, %38 : vector<16x1xf32>
      %40 = arith.mulf %34, %34 : vector<16x1xf32>
      %41 = arith.subf %39, %40 : vector<16x1xf32>
      %cst_25 = arith.constant 9.99999974E-6 : f32
      %42 = vector.broadcast %cst_25 : f32 to vector<16x1xf32>
      %43 = arith.addf %41, %42 : vector<16x1xf32>
      %44 = math.rsqrt %43 : vector<16x1xf32>
      %c0_26 = arith.constant 0 : index
      %c0_27 = arith.constant 0 : index
      %45 = vector.load %arg3[%c0_26, %c0_27] : memref<1x128xf32, #tpu.memory_space<vmem>>, vector<1x128xf32>
      %c0_28 = arith.constant 0 : index
      %c0_29 = arith.constant 0 : index
      %46 = vector.load %arg4[%c0_28, %c0_29] : memref<1x128xf32, #tpu.memory_space<vmem>>, vector<1x128xf32>
      %47 = vector.broadcast %44 : vector<16x1xf32> to vector<16x128xf32>
      %48 = vector.broadcast %45 : vector<1x128xf32> to vector<16x128xf32>
      %49 = arith.mulf %47, %48 : vector<16x128xf32>
      %50 = vector.broadcast %34 : vector<16x1xf32> to vector<16x128xf32>
      %51 = arith.mulf %50, %49 : vector<16x128xf32>
      %52 = vector.broadcast %46 : vector<1x128xf32> to vector<16x128xf32>
      %53 = arith.subf %52, %51 : vector<16x128xf32>
      %54 = arith.mulf %30, %49 : vector<16x128xf32>
      %55 = arith.addf %54, %53 : vector<16x128xf32>
      %c0_30 = arith.constant 0 : index
      %c0_31 = arith.constant 0 : index
      %56 = vector.load %arg10[%c0_30, %c0_31] : memref<16x128xf32, #tpu.memory_space<vmem>>, vector<16x128xf32>
      tpu.vector_store %arg10[%c0_30, %c0_31], %55 {strides = array<i32>} : memref<16x128xf32, #tpu.memory_space<vmem>>, vector<16x128xf32>,
      %cst_32 = arith.constant 0.000000e+00 : f32
      %57 = vector.broadcast %cst_32 : f32 to vector<16x128xf32>
      %c0_33 = arith.constant 0 : index
      %c0_34 = arith.constant 0 : index
      %58 = vector.load %arg11[%c0_33, %c0_34] : memref<16x128xf32, #tpu.memory_space<vmem>>, vector<16x128xf32>
      tpu.vector_store %arg11[%c0_33, %c0_34], %57 {strides = array<i32>} : memref<16x128xf32, #tpu.memory_space<vmem>>, vector<16x128xf32>,
    } else {
    }
    %c0 = arith.constant 0 : index
    %c0_1 = arith.constant 0 : index
    %3 = vector.load %arg10[%c0, %c0_1] : memref<16x128xf32, #tpu.memory_space<vmem>>, vector<16x128xf32>
    %c0_2 = arith.constant 0 : index
    %c0_3 = arith.constant 0 : index
    %4 = vector.load %arg5[%c0_2, %c0_3] : memref<128x128xf32, #tpu.memory_space<vmem>>, vector<128x128xf32>
    %cst = arith.constant dense<0.000000e+00> : vector<16x128xf32>
    %5 = tpu.matmul %3, %4, %cst {dimension_numbers = #tpu.dot_dimension_numbers<[1], [0], [0], [1], [0, 0, 1, 1], [], []>} : vector<16x128xf32>, vector<128x128xf32>, vector<16x128xf32> -> vector<16x128xf32>
    %c0_4 = arith.constant 0 : index
    %c0_5 = arith.constant 0 : index
    %6 = vector.load %arg6[%c0_4, %c0_5] : memref<1x128xf32, #tpu.memory_space<vmem>>, vector<1x128xf32>
    %7 = vector.broadcast %6 : vector<1x128xf32> to vector<16x128xf32>
    %8 = arith.addf %5, %7 : vector<16x128xf32>
    %9 = arith.mulf %8, %8 : vector<16x128xf32>
    %10 = arith.mulf %8, %9 : vector<16x128xf32>
    %cst_6 = arith.constant 4.471500e-02 : f32
    %11 = vector.broadcast %cst_6 : f32 to vector<16x128xf32>
    %12 = arith.mulf %11, %10 : vector<16x128xf32>
    %13 = arith.addf %8, %12 : vector<16x128xf32>
    %cst_7 = arith.constant 0.797884583 : f32
    %14 = vector.broadcast %cst_7 : f32 to vector<16x128xf32>
    %15 = arith.mulf %14, %13 : vector<16x128xf32>
    %16 = math.tanh %15 : vector<16x128xf32>
    %cst_8 = arith.constant 1.000000e+00 : f32
    %17 = vector.broadcast %cst_8 : f32 to vector<16x128xf32>
    %18 = arith.addf %17, %16 : vector<16x128xf32>
    %cst_9 = arith.constant 5.000000e-01 : f32
    %19 = vector.broadcast %cst_9 : f32 to vector<16x128xf32>
    %20 = arith.mulf %19, %18 : vector<16x128xf32>
    %21 = arith.mulf %8, %20 : vector<16x128xf32>
    %c0_10 = arith.constant 0 : index
    %c0_11 = arith.constant 0 : index
    %22 = vector.load %arg11[%c0_10, %c0_11] : memref<16x128xf32, #tpu.memory_space<vmem>>, vector<16x128xf32>
    %c0_12 = arith.constant 0 : index
    %c0_13 = arith.constant 0 : index
    %23 = vector.load %arg7[%c0_12, %c0_13] : memref<128x128xf32, #tpu.memory_space<vmem>>, vector<128x128xf32>
    %cst_14 = arith.constant dense<0.000000e+00> : vector<16x128xf32>
    %24 = tpu.matmul %21, %23, %cst_14 {dimension_numbers = #tpu.dot_dimension_numbers<[1], [0], [0], [1], [0, 0, 1, 1], [], []>} : vector<16x128xf32>, vector<128x128xf32>, vector<16x128xf32> -> vector<16x128xf32>
    %25 = arith.addf %22, %24 : vector<16x128xf32>
    %c0_15 = arith.constant 0 : index
    %c0_16 = arith.constant 0 : index
    %26 = vector.load %arg11[%c0_15, %c0_16] : memref<16x128xf32, #tpu.memory_space<vmem>>, vector<16x128xf32>
    tpu.vector_store %arg11[%c0_15, %c0_16], %25 {strides = array<i32>} : memref<16x128xf32, #tpu.memory_space<vmem>>, vector<16x128xf32>,
    %c0_i32_17 = arith.constant 0 : i32
    %27 = arith.cmpi eq, %arg1, %c0_i32_17 : i32
    %28 = arith.extui %27 : i1 to i32
    %c0_i32_18 = arith.constant 0 : i32
    %29 = arith.cmpi ne, %28, %c0_i32_18 : i32
    scf.if %29 {
      %c0_19 = arith.constant 0 : index
      %c0_20 = arith.constant 0 : index
      %30 = vector.load %arg11[%c0_19, %c0_20] : memref<16x128xf32, #tpu.memory_space<vmem>>, vector<16x128xf32>
      %c0_21 = arith.constant 0 : index
      %c0_22 = arith.constant 0 : index
      %31 = vector.load %arg8[%c0_21, %c0_22] : memref<1x128xf32, #tpu.memory_space<vmem>>, vector<1x128xf32>
      %32 = vector.broadcast %31 : vector<1x128xf32> to vector<16x128xf32>
      %33 = arith.addf %30, %32 : vector<16x128xf32>
      %c0_23 = arith.constant 0 : index
      %c0_24 = arith.constant 0 : index
      %34 = vector.load %arg9[%c0_23, %c0_24] : memref<16x128xf32, #tpu.memory_space<vmem>>, vector<16x128xf32>
      tpu.vector_store %arg9[%c0_23, %c0_24], %33 {strides = array<i32>} : memref<16x128xf32, #tpu.memory_space<vmem>>, vector<16x128xf32>,
    } else {
    }
    return
  }
  func.func @transform_0(%arg0: i32, %arg1: i32) -> (i32, i32) {
    %c0_i32 = arith.constant 0 : i32
    %c0_i32_0 = arith.constant 0 : i32
    return %arg0, %c0_i32 : i32, i32
  }
  func.func @transform_1(%arg0: i32, %arg1: i32) -> (i32, i32) {
    %c0_i32 = arith.constant 0 : i32
    %c0_i32_0 = arith.constant 0 : i32
    %c0_i32_1 = arith.constant 0 : i32
    return %c0_i32, %c0_i32_0 : i32, i32
  }
  func.func @transform_2(%arg0: i32, %arg1: i32) -> (i32, i32) {
    %c0_i32 = arith.constant 0 : i32
    %c0_i32_0 = arith.constant 0 : i32
    %c0_i32_1 = arith.constant 0 : i32
    return %c0_i32, %c0_i32_0 : i32, i32
  }
  func.func @transform_3(%arg0: i32, %arg1: i32) -> (i32, i32) {
    %c0_i32 = arith.constant 0 : i32
    %c0_i32_0 = arith.constant 0 : i32
    return %c0_i32, %arg1 : i32, i32
  }
  func.func @transform_4(%arg0: i32, %arg1: i32) -> (i32, i32) {
    %c0_i32 = arith.constant 0 : i32
    %c0_i32_0 = arith.constant 0 : i32
    return %c0_i32, %arg1 : i32, i32
  }
  func.func @transform_5(%arg0: i32, %arg1: i32) -> (i32, i32) {
    %c0_i32 = arith.constant 0 : i32
    %c0_i32_0 = arith.constant 0 : i32
    return %arg1, %c0_i32 : i32, i32
  }
  func.func @transform_6(%arg0: i32, %arg1: i32) -> (i32, i32) {
    %c0_i32 = arith.constant 0 : i32
    %c0_i32_0 = arith.constant 0 : i32
    %c0_i32_1 = arith.constant 0 : i32
    return %c0_i32, %c0_i32_0 : i32, i32
  }
  func.func @transform_7(%arg0: i32, %arg1: i32) -> (i32, i32) {
    %c0_i32 = arith.constant 0 : i32
    %c0_i32_0 = arith.constant 0 : i32
    return %arg0, %c0_i32 : i32, i32
  }
}

</mosaic_0001>

<llo_original>
// kernel: tpu_custom_call.1
$region0: #{tpu_custom_call.1}
  #allocation0 [shape = 'u32[]', space=smem, size = 0x4, offset = 0x4, fixed_abs, tag = 'smem constant byte address 0x4 - core index']
  #allocation1 [shape = 'u32[144,128]{1,0:T(1,128)}', space=vmem, size = 0x12000, scoped, tag = 'internal scratch']
  #allocation2 [shape = 'f32[16,128]{1,0:T(8,128)}', space=vmem, size = 0x2000, scoped, tag = 'scratch operand']
  #allocation3 [shape = 'f32[16,128]{1,0:T(8,128)}', space=vmem, size = 0x2000, scoped, tag = 'scratch operand']
  %s0 = inlined_call_operand.hbm [shape: f32[16,128], index: 0, kind: input, shape index: {}]
  %s1 = inlined_call_operand.vmem [shape: f32[1,128], index: 1, kind: input, shape index: {}]
  %s2 = inlined_call_operand.vmem [shape: f32[1,128], index: 2, kind: input, shape index: {}]
  %s3 = inlined_call_operand.hbm [shape: f32[128,128], index: 3, kind: input, shape index: {}]
  %s4 = inlined_call_operand.vmem [shape: f32[1,128], index: 4, kind: input, shape index: {}]
  %s5 = inlined_call_operand.hbm [shape: f32[128,128], index: 5, kind: input, shape index: {}]
  %s6 = inlined_call_operand.vmem [shape: f32[1,128], index: 6, kind: input, shape index: {}]
  %s7 = inlined_call_operand.hbm [shape: f32[16,128], index: 7, kind: output, shape index: {}]
  %s8 = sld [smem:[#allocation0]]
  $region58: #{tpu_custom_call.1} parent=0
    _
  %s10 = ssub.s32 1, %s8
  %s11 = scalar_select 0, %s10, %s8
  $region1: #{tpu_custom_call.1} parent=0
    #allocation4 [shape = 'u8[8192]{0}', space=vmem, size = 0x2000, scoped, tag = 'input window, operand 0, single buffered']
    #allocation5 [shape = 's32[1]{0}', space=sflag, size = 0x4, scoped, tag = 'scoped memory for tpu_custom_call.1']
    #allocation6 [shape = 's32[1]{0}', space=sflag, size = 0x4, scoped, tag = 'scoped memory for tpu_custom_call.1']
    #allocation7 [shape = 'u8[65536]{0}', space=vmem, size = 0x10000, scoped, tag = 'input window, operand 3, single buffered']
    #allocation8 [shape = 's32[1]{0}', space=sflag, size = 0x4, scoped, tag = 'scoped memory for tpu_custom_call.1']
    #allocation9 [shape = 'u8[65536]{0}', space=vmem, size = 0x10000, scoped, tag = 'input window, operand 5, single buffered']
    #allocation10 [shape = 'u8[8192]{0}', space=vmem, size = 0x2000, scoped, tag = 'output window, operand 0, single buffered']
    %12 = vsyncpa [#allocation5], 0
    %13 = vsyncpa [#allocation8], 0
    %14 = vsyncpa [#allocation6], 0
    // Predicated region
    $region2: #{tpu_custom_call.1} parent=1 // pred_check
      _
    $region3: #{tpu_custom_call.1} parent=1 // pred_check_branch
      %16 = sbr.rel (0) target = $region5
    $region4: #{tpu_custom_call.1} parent=1 // pred_region
      %s18 = ssub.s32 256, 256
      %19 = vsyncadd [#allocation5], %s18
      %s20 = sshll.u32 [#allocation4], 4
      %s21 = int_to_ptr.vmem [resolvable:$true] %s20
      %26 = dma.hbm_to_vmem [thread:$0]  %s0, 256, %s21, [#allocation5], 128, 128, 8
    $region5: #{tpu_custom_call.1} parent=1 // pred_fallthru
      _
    // Predicated region
    $region6: #{tpu_custom_call.1} parent=1 // pred_check
      _
    $region7: #{tpu_custom_call.1} parent=1 // pred_check_branch
      %28 = sbr.rel (0) target = $region9
    $region8: #{tpu_custom_call.1} parent=1 // pred_region
      _
    $region9: #{tpu_custom_call.1} parent=1 // pred_fallthru
      _
    // Predicated region
    $region10: #{tpu_custom_call.1} parent=1 // pred_check
      _
    $region11: #{tpu_custom_call.1} parent=1 // pred_check_branch
      %30 = sbr.rel (0) target = $region13
    $region12: #{tpu_custom_call.1} parent=1 // pred_region
      _
    $region13: #{tpu_custom_call.1} parent=1 // pred_fallthru
      _
    // Predicated region
    $region14: #{tpu_custom_call.1} parent=1 // pred_check
      _
    $region15: #{tpu_custom_call.1} parent=1 // pred_check_branch
      %32 = sbr.rel (0) target = $region17
    $region16: #{tpu_custom_call.1} parent=1 // pred_region
      %s34 = ssub.s32 2048, 2048
      %35 = vsyncadd [#allocation8], %s34
      %s36 = sshll.u32 [#allocation7], 4
      %s37 = int_to_ptr.vmem [resolvable:$true] %s36
      %42 = dma.hbm_to_vmem [thread:$0]  %s3, 2048, %s37, [#allocation8], 128, 128, 8
    $region17: #{tpu_custom_call.1} parent=1 // pred_fallthru
      _
    // Predicated region
    $region18: #{tpu_custom_call.1} parent=1 // pred_check
      _
    $region19: #{tpu_custom_call.1} parent=1 // pred_check_branch
      %44 = sbr.rel (0) target = $region21
    $region20: #{tpu_custom_call.1} parent=1 // pred_region
      _
    $region21: #{tpu_custom_call.1} parent=1 // pred_fallthru
      _
    // Predicated region
    $region22: #{tpu_custom_call.1} parent=1 // pred_check
      _
    $region23: #{tpu_custom_call.1} parent=1 // pred_check_branch
      %46 = sbr.rel (0) target = $region25
    $region24: #{tpu_custom_call.1} parent=1 // pred_region
      %s48 = ssub.s32 2048, 2048
      %49 = vsyncadd [#allocation8], %s48
      %s50 = sshll.u32 [#allocation9], 4
      %s51 = int_to_ptr.vmem [resolvable:$true] %s50
      %56 = dma.hbm_to_vmem [thread:$0]  %s5, 2048, %s51, [#allocation8], 128, 128, 8
    $region25: #{tpu_custom_call.1} parent=1 // pred_fallthru
      _
    // Predicated region
    $region26: #{tpu_custom_call.1} parent=1 // pred_check
      _
    $region27: #{tpu_custom_call.1} parent=1 // pred_check_branch
      %58 = sbr.rel (0) target = $region29
    $region28: #{tpu_custom_call.1} parent=1 // pred_region
      _
    $region29: #{tpu_custom_call.1} parent=1 // pred_fallthru
      _
    // Predicated region
    $region30: #{tpu_custom_call.1} parent=1 // pred_check
      _
    $region31: #{tpu_custom_call.1} parent=1 // pred_check_branch
      %60 = sbr.rel (0) target = $region33
    $region32: #{tpu_custom_call.1} parent=1 // pred_region
      %61 = dma.done [#allocation5], 256
    $region33: #{tpu_custom_call.1} parent=1 // pred_fallthru
      _
    // Predicated region
    $region34: #{tpu_custom_call.1} parent=1 // pred_check
      _
    $region35: #{tpu_custom_call.1} parent=1 // pred_check_branch
      %63 = sbr.rel (0) target = $region37
    $region36: #{tpu_custom_call.1} parent=1 // pred_region
      %64 = dma.done [#allocation8], 2048
    $region37: #{tpu_custom_call.1} parent=1 // pred_fallthru
      _
    // Predicated region
    $region38: #{tpu_custom_call.1} parent=1 // pred_check
      _
    $region39: #{tpu_custom_call.1} parent=1 // pred_check_branch
      %66 = sbr.rel (0) target = $region41
    $region40: #{tpu_custom_call.1} parent=1 // pred_region
      %67 = dma.done [#allocation8], 2048
    $region41: #{tpu_custom_call.1} parent=1 // pred_fallthru
      _
    %p68 = scmp.eq.s32.totalorder 0, 0
    // Predicated region
    $region42: #{tpu_custom_call.1} parent=1 // pred_check
      %p69 = pneg %p68
    $region43: #{tpu_custom_call.1} parent=1 // pred_check_branch
      %71 = sbr.rel (%p69) target = $region45
    $region44: #{tpu_custom_call.1} parent=1 // pred_region
      %v72 = vld [vmem:[#allocation4] sm:$0xff]
      %v73 = vld [vmem:[#allocation4 + $0x8] sm:$0xff]
      %74 = vadd.xlane.f32.xlu0 %v72
      %v75 = vpop.xlane.xlu0 %74
      %76 = vadd.xlane.f32.xlu0 %v73
      %v77 = vpop.xlane.xlu0 %76
      %v78 = vmul.f32 %v75, 0.03125
      %v79 = vmul.f32 %v77, 0.03125
      %v80 = vmul.f32 %v72, %v72
      %v81 = vmul.f32 %v73, %v73
      %82 = vadd.xlane.f32.xlu0 %v80
      %v83 = vpop.xlane.xlu0 %82
      %84 = vadd.xlane.f32.xlu0 %v81
      %v85 = vpop.xlane.xlu0 %84
      %v86 = vmul.f32 %v83, 0.03125
      %v87 = vmul.f32 %v85, 0.03125
      %v88 = vmul.f32 %v78, %v78
      %v89 = vmul.f32 %v79, %v79
      %v90 = vsub.f32 %v86, %v88
      %v91 = vsub.f32 %v87, %v89
      %v92 = vadd.f32 %v90, 1e-05
      %v93 = vadd.f32 %v91, 1e-05
      %v94 = vrsqrt.pop %v92
      %v95 = vrsqrt.pop %v93
      %v96 = vld [vmem:[%s1] sm:$0x1]
      %v97 = vld [vmem:[%s2] sm:$0x1]
      %v99 = vlaneseq
      %v100 = vshrl.u32 %v99, 7
      %v101 = vsub.s32 0, %v100
      %v102 = vrot.slane %v96, %v101
      %v104 = vmul.f32 %v94, %v102
      %v105 = vmul.f32 %v95, %v102
      %v106 = vmul.f32 %v78, %v104
      %v107 = vmul.f32 %v79, %v105
      %v109 = vlaneseq
      %v110 = vshrl.u32 %v109, 7
      %v111 = vsub.s32 0, %v110
      %v112 = vrot.slane %v97, %v111
      %v114 = vsub.f32 %v112, %v106
      %v115 = vsub.f32 %v112, %v107
      %v116 = vmul.f32 %v72, %v104
      %v117 = vmul.f32 %v73, %v105
      %v118 = vadd.f32 %v116, %v114
      %v119 = vadd.f32 %v117, %v115
      %120 = vst [vmem:[#allocation2] sm:$0xff] %v118
      %121 = vst [vmem:[#allocation2 + $0x8] sm:$0xff] %v119
      %122 = vst [vmem:[#allocation3] sm:$0xff] 0.0
      %123 = vst [vmem:[#allocation3 + $0x8] sm:$0xff] 0.0
    $region45: #{tpu_custom_call.1} parent=1 // pred_fallthru
      _
    %v124 = vld [vmem:[#allocation2] sm:$0xff]
    %v125 = vld [vmem:[#allocation2 + $0x8] sm:$0xff]
    %v126 = vld [vmem:[#allocation7] sm:$0xff]
    %v127 = vld [vmem:[#allocation7 + $0x8] sm:$0xff]
    %v128 = vld [vmem:[#allocation7 + $0x10] sm:$0xff]
    %v129 = vld [vmem:[#allocation7 + $0x18] sm:$0xff]
    %v130 = vld [vmem:[#allocation7 + $0x20] sm:$0xff]
    %v131 = vld [vmem:[#allocation7 + $0x28] sm:$0xff]
    %v132 = vld [vmem:[#allocation7 + $0x30] sm:$0xff]
    %v133 = vld [vmem:[#allocation7 + $0x38] sm:$0xff]
    %v134 = vld [vmem:[#allocation7 + $0x40] sm:$0xff]
    %v135 = vld [vmem:[#allocation7 + $0x48] sm:$0xff]
    %v136 = vld [vmem:[#allocation7 + $0x50] sm:$0xff]
    %v137 = vld [vmem:[#allocation7 + $0x58] sm:$0xff]
    %v138 = vld [vmem:[#allocation7 + $0x60] sm:$0xff]
    %v139 = vld [vmem:[#allocation7 + $0x68] sm:$0xff]
    %v140 = vld [vmem:[#allocation7 + $0x70] sm:$0xff]
    %v141 = vld [vmem:[#allocation7 + $0x78] sm:$0xff]
    %v142 = vld [vmem:[%s4] sm:$0x1]
    %v144 = vlaneseq
    %v145 = vshrl.u32 %v144, 7
    %v146 = vsub.s32 0, %v145
    %v147 = vrot.slane %v142, %v146
    %149 = vmatprep.subr.mxu0 0.0
    %150 = vmatpush1.msra.mxu0 %v126
    %151 = vmatprep.subr.mxu0 0.0
    %152 = vmatpush1.msra.mxu0 %v127
    %153 = vmatprep.subr.mxu0 0.0
    %154 = vmatpush1.msra.mxu0 %v128
    %155 = vmatprep.subr.mxu0 0.0
    %156 = vmatpush1.msra.mxu0 %v129
    %157 = vmatprep.subr.mxu0 0.0
    %158 = vmatpush1.msra.mxu0 %v130
    %159 = vmatprep.subr.mxu0 0.0
    %160 = vmatpush1.msra.mxu0 %v131
    %161 = vmatprep.subr.mxu0 0.0
    %162 = vmatpush1.msra.mxu0 %v132
    %163 = vmatprep.subr.mxu0 0.0
    %164 = vmatpush1.msra.mxu0 %v133
    %165 = vmatprep.subr.mxu0 0.0
    %166 = vmatpush1.msra.mxu0 %v134
    %167 = vmatprep.subr.mxu0 0.0
    %168 = vmatpush1.msra.mxu0 %v135
    %169 = vmatprep.subr.mxu0 0.0
    %170 = vmatpush1.msra.mxu0 %v136
    %171 = vmatprep.subr.mxu0 0.0
    %172 = vmatpush1.msra.mxu0 %v137
    %173 = vmatprep.subr.mxu0 0.0
    %174 = vmatpush1.msra.mxu0 %v138
    %175 = vmatprep.subr.mxu0 0.0
    %176 = vmatpush1.msra.mxu0 %v139
    %177 = vmatprep.subr.mxu0 0.0
    %178 = vmatpush1.msra.mxu0 %v140
    %179 = vmatprep.subr.mxu0 0.0
    %180 = vmatpush1.msra.mxu0 %v141
    %181 = vmatprep.subr.mxu0 0.0
    %182 = vmatpush1.msra.mxu0 0.0
    %183 = vmatprep.subr.mxu0 0.0
    %184 = vmatpush1.msra.mxu0 0.0
    %185 = vmatprep.subr.mxu0 0.0
    %186 = vmatpush1.msra.mxu0 0.0
    %187 = vmatprep.subr.mxu0 0.0
    %188 = vmatpush1.msra.mxu0 0.0
    %189 = vmatprep.subr.mxu0 0.0
    %190 = vmatpush1.msra.mxu0 0.0
    %191 = vmatprep.subr.mxu0 0.0
    %192 = vmatpush1.msra.mxu0 0.0
    %193 = vmatprep.subr.mxu0 0.0
    %194 = vmatpush1.msra.mxu0 0.0
    %195 = vmatprep.subr.mxu0 0.0
    %196 = vmatpush1.msra.mxu0 0.0
    %197 = vmatprep.subr.mxu0 0.0
    %198 = vmatpush1.msra.mxu0 0.0
    %199 = vmatprep.subr.mxu0 0.0
    %200 = vmatpush1.msra.mxu0 0.0
    %201 = vmatprep.subr.mxu0 0.0
    %202 = vmatpush1.msra.mxu0 0.0
    %203 = vmatprep.subr.mxu0 0.0
    %204 = vmatpush1.msra.mxu0 0.0
    %205 = vmatprep.subr.mxu0 0.0
    %206 = vmatpush1.msra.mxu0 0.0
    %207 = vmatprep.subr.mxu0 0.0
    %208 = vmatpush1.msra.mxu0 0.0
    %209 = vmatprep.subr.mxu0 0.0
    %210 = vmatpush1.msra.mxu0 0.0
    %211 = vmatprep.subr.mxu0 0.0
    %212 = vmatpush1.msra.mxu0 0.0
    %213 = vmatprep.mubr.f32.mxu0 0.0
    %214 = vmatmul.mubr.f32.gmra.mrb[0].mxu0 %v124
    %v215 = vpop.f32.mrb[0].mxu0
    %v216 = vadd.f32 %v147, %v215
    %v217 = vpop.f32.mrb[0].mxu0
    %218 = vmatprep.mubr.f32.mxu0 0.0
    %219 = vmatmul.mubr.f32.gmra.mrb[0].mxu0 %v125
    %v220 = vpop.f32.mrb[0].mxu0
    %v221 = vadd.f32 %v147, %v220
    %v222 = vpop.f32.mrb[0].mxu0
    %223 = vdwg.mxu0
    %v224 = vmul.f32 %v216, %v216
    %v225 = vmul.f32 %v221, %v221
    %v226 = vmul.f32 %v216, %v224
    %v227 = vmul.f32 %v221, %v225
    %v228 = vmul.f32 %v226, 0.044715
    %v229 = vmul.f32 %v227, 0.044715
    %v230 = vadd.f32 %v216, %v228
    %v231 = vadd.f32 %v221, %v229
    %v232 = vmul.f32 %v230, 0.7978846
    %v233 = vmul.f32 %v231, 0.7978846
    %v234 = vtanh.pop %v232
    %v235 = vtanh.pop %v233
    %v236 = vadd.f32 %v234, 1.0
    %v237 = vadd.f32 %v235, 1.0
    %v238 = vmul.f32 %v236, 0.5
    %v239 = vmul.f32 %v237, 0.5
    %v240 = vmul.f32 %v216, %v238
    %v241 = vmul.f32 %v221, %v239
    %v242 = vld [vmem:[#allocation3] sm:$0xff]
    %v243 = vld [vmem:[#allocation3 + $0x8] sm:$0xff]
    %v244 = vld [vmem:[#allocation9] sm:$0xff]
    %v245 = vld [vmem:[#allocation9 + $0x8] sm:$0xff]
    %v246 = vld [vmem:[#allocation9 + $0x10] sm:$0xff]
    %v247 = vld [vmem:[#allocation9 + $0x18] sm:$0xff]
    %v248 = vld [vmem:[#allocation9 + $0x20] sm:$0xff]
    %v249 = vld [vmem:[#allocation9 + $0x28] sm:$0xff]
    %v250 = vld [vmem:[#allocation9 + $0x30] sm:$0xff]
    %v251 = vld [vmem:[#allocation9 + $0x38] sm:$0xff]
    %v252 = vld [vmem:[#allocation9 + $0x40] sm:$0xff]
    %v253 = vld [vmem:[#allocation9 + $0x48] sm:$0xff]
    %v254 = vld [vmem:[#allocation9 + $0x50] sm:$0xff]
    %v255 = vld [vmem:[#allocation9 + $0x58] sm:$0xff]
    %v256 = vld [vmem:[#allocation9 + $0x60] sm:$0xff]
    %v257 = vld [vmem:[#allocation9 + $0x68] sm:$0xff]
    %v258 = vld [vmem:[#allocation9 + $0x70] sm:$0xff]
    %v259 = vld [vmem:[#allocation9 + $0x78] sm:$0xff]
    %260 = vmatprep.subr.mxu0 0.0
    %261 = vmatpush1.msra.mxu0 %v244
    %262 = vmatprep.subr.mxu0 0.0
    %263 = vmatpush1.msra.mxu0 %v245
    %264 = vmatprep.subr.mxu0 0.0
    %265 = vmatpush1.msra.mxu0 %v246
    %266 = vmatprep.subr.mxu0 0.0
    %267 = vmatpush1.msra.mxu0 %v247
    %268 = vmatprep.subr.mxu0 0.0
    %269 = vmatpush1.msra.mxu0 %v248
    %270 = vmatprep.subr.mxu0 0.0
    %271 = vmatpush1.msra.mxu0 %v249
    %272 = vmatprep.subr.mxu0 0.0
    %273 = vmatpush1.msra.mxu0 %v250
    %274 = vmatprep.subr.mxu0 0.0
    %275 = vmatpush1.msra.mxu0 %v251
    %276 = vmatprep.subr.mxu0 0.0
    %277 = vmatpush1.msra.mxu0 %v252
    %278 = vmatprep.subr.mxu0 0.0
    %279 = vmatpush1.msra.mxu0 %v253
    %280 = vmatprep.subr.mxu0 0.0
    %281 = vmatpush1.msra.mxu0 %v254
    %282 = vmatprep.subr.mxu0 0.0
    %283 = vmatpush1.msra.mxu0 %v255
    %284 = vmatprep.subr.mxu0 0.0
    %285 = vmatpush1.msra.mxu0 %v256
    %286 = vmatprep.subr.mxu0 0.0
    %287 = vmatpush1.msra.mxu0 %v257
    %288 = vmatprep.subr.mxu0 0.0
    %289 = vmatpush1.msra.mxu0 %v258
    %290 = vmatprep.subr.mxu0 0.0
    %291 = vmatpush1.msra.mxu0 %v259
    %292 = vmatprep.subr.mxu0 0.0
    %293 = vmatpush1.msra.mxu0 0.0
    %294 = vmatprep.subr.mxu0 0.0
    %295 = vmatpush1.msra.mxu0 0.0
    %296 = vmatprep.subr.mxu0 0.0
    %297 = vmatpush1.msra.mxu0 0.0
    %298 = vmatprep.subr.mxu0 0.0
    %299 = vmatpush1.msra.mxu0 0.0
    %300 = vmatprep.subr.mxu0 0.0
    %301 = vmatpush1.msra.mxu0 0.0
    %302 = vmatprep.subr.mxu0 0.0
    %303 = vmatpush1.msra.mxu0 0.0
    %304 = vmatprep.subr.mxu0 0.0
    %305 = vmatpush1.msra.mxu0 0.0
    %306 = vmatprep.subr.mxu0 0.0
    %307 = vmatpush1.msra.mxu0 0.0
    %308 = vmatprep.subr.mxu0 0.0
    %309 = vmatpush1.msra.mxu0 0.0
    %310 = vmatprep.subr.mxu0 0.0
    %311 = vmatpush1.msra.mxu0 0.0
    %312 = vmatprep.subr.mxu0 0.0
    %313 = vmatpush1.msra.mxu0 0.0
    %314 = vmatprep.subr.mxu0 0.0
    %315 = vmatpush1.msra.mxu0 0.0
    %316 = vmatprep.subr.mxu0 0.0
    %317 = vmatpush1.msra.mxu0 0.0
    %318 = vmatprep.subr.mxu0 0.0
    %319 = vmatpush1.msra.mxu0 0.0
    %320 = vmatprep.subr.mxu0 0.0
    %321 = vmatpush1.msra.mxu0 0.0
    %322 = vmatprep.subr.mxu0 0.0
    %323 = vmatpush1.msra.mxu0 0.0
    %324 = vmatprep.mubr.f32.mxu0 0.0
    %325 = vmatmul.mubr.f32.gmra.mrb[0].mxu0 %v240
    %v326 = vpop.f32.mrb[0].mxu0
    %v327 = vadd.f32 0.0, %v326
    %v328 = vpop.f32.mrb[0].mxu0
    %329 = vmatprep.mubr.f32.mxu0 0.0
    %330 = vmatmul.mubr.f32.gmra.mrb[0].mxu0 %v241
    %v331 = vpop.f32.mrb[0].mxu0
    %v332 = vadd.f32 0.0, %v331
    %v333 = vpop.f32.mrb[0].mxu0
    %334 = vdwg.mxu0
    %v335 = vadd.f32 %v242, %v327
    %v336 = vadd.f32 %v243, %v332
    %337 = vst [vmem:[#allocation3] sm:$0xff] %v335
    %338 = vst [vmem:[#allocation3 + $0x8] sm:$0xff] %v336
    // Predicated region
    $region46: #{tpu_custom_call.1} parent=1 // pred_check
      %p339 = pneg %p68
    $region47: #{tpu_custom_call.1} parent=1 // pred_check_branch
      %341 = sbr.rel (%p339) target = $region49
    $region48: #{tpu_custom_call.1} parent=1 // pred_region
      %v342 = vld [vmem:[#allocation3] sm:$0xff]
      %v343 = vld [vmem:[#allocation3 + $0x8] sm:$0xff]
      %v344 = vld [vmem:[%s6] sm:$0x1]
      %v346 = vlaneseq
      %v347 = vshrl.u32 %v346, 7
      %v348 = vsub.s32 0, %v347
      %v349 = vrot.slane %v344, %v348
      %v351 = vadd.f32 %v342, %v349
      %v352 = vadd.f32 %v343, %v349
      %353 = vst [vmem:[#allocation10] sm:$0xff] %v351
      %354 = vst [vmem:[#allocation10 + $0x8] sm:$0xff] %v352
    $region49: #{tpu_custom_call.1} parent=1 // pred_fallthru
      _
    // Predicated region
    $region50: #{tpu_custom_call.1} parent=1 // pred_check
      _
    $region51: #{tpu_custom_call.1} parent=1 // pred_check_branch
      %356 = sbr.rel (0) target = $region53
    $region52: #{tpu_custom_call.1} parent=1 // pred_region
      %s358 = ssub.s32 256, 256
      %359 = vsyncadd [#allocation6], %s358
      %s360 = sshll.u32 [#allocation10], 4
      %s361 = int_to_ptr.vmem [resolvable:$true] %s360
      %366 = dma.vmem_to_hbm [thread:$0]  %s361, 256, %s7, [#allocation6], 128, 128, 8
    $region53: #{tpu_custom_call.1} parent=1 // pred_fallthru
      _
    // Predicated region
    $region54: #{tpu_custom_call.1} parent=1 // pred_check
      _
    $region55: #{tpu_custom_call.1} parent=1 // pred_check_branch
      %368 = sbr.rel (0) target = $region57
    $region56: #{tpu_custom_call.1} parent=1 // pred_region
      %369 = dma.done [#allocation6], 256
    $region57: #{tpu_custom_call.1} parent=1 // pred_fallthru
      _
    %370 = vsyncpa [#allocation5], 1
    %371 = vsyncpa [#allocation8], 1
    %372 = vsyncpa [#allocation6], 1

</llo_original>
